<compile_context>
chip_gen: v7x
topology: tpu7x:2x2x1
jax: 0.10.0
libtpu: 0.0.40
codegen_flags: <defaults>
</compile_context>

<pallas_src>
import jax
import jax.numpy as jnp
from jax.experimental import pallas as pl
from jax.experimental.pallas import tpu as pltpu


def _conv2d_gemm_kernel(w_ref, p_ref, b_ref, o_ref):
    # w_ref: (Cout, KH*KW*Cin)        flattened weight, (kh, kw, ci) column order
    # p_ref: (1, KH*KW*Cin, Mp)       im2col patches for one batch element
    # b_ref: (Cout, 1)
    # o_ref: (1, Cout, Mp)            lane-dense output (spatial on the lane dim)
    acc = jnp.dot(w_ref[...], p_ref[0], preferred_element_type=jnp.float32)  # (Cout, Mp)
    o_ref[0] = (acc + b_ref[...]).astype(o_ref.dtype)


def my_conv2d(x_nchw, weight_oihw, bias, stride=1):
    """Pallas equivalent of F.conv2d(x, weight, bias, stride) (valid padding)."""
    N, Cin, H, W = x_nchw.shape
    Cout, Cin_w, KH, KW = weight_oihw.shape
    assert Cin == Cin_w
    Ho = (H - KH) // stride + 1
    Wo = (W - KW) // stride + 1
    M = Ho * Wo
    Mp = ((M + 127) // 128) * 128          # pad spatial/lane dim to a multiple of 128

    # ---- Wrapper-side layout plumbing (one-time, tiny XLA ops) ----------------
    # im2col in (kh, kw, ci) tap order, spatial on the last (lane) axis:
    #   patches[n, (kh*KW + kw)*Cin + ci, ho*Wo + wo] = x[n, ci, ho*s + kh, wo*s + kw]
    taps = []
    for kh in range(KH):
        for kw in range(KW):
            p = jax.lax.slice(
                x_nchw,
                (0, 0, kh, kw),
                (N, Cin, kh + (Ho - 1) * stride + 1, kw + (Wo - 1) * stride + 1),
                (1, 1, stride, stride),
            )                                              # (N, Cin, Ho, Wo)
            taps.append(p.reshape(N, Cin, M))
    patches = jnp.concatenate(taps, axis=1)                # (N, KH*KW*Cin, M)
    patches = jnp.pad(patches, ((0, 0), (0, 0), (0, Mp - M)))

    # Weight OIHW -> (Cout, KH*KW*Cin) with matching (kh, kw, ci) column order.
    w2d = jnp.transpose(weight_oihw, (0, 2, 3, 1)).reshape(Cout, KH * KW * Cin)
    b2d = bias.reshape(Cout, 1)

    Kc = KH * KW * Cin
    out = pl.pallas_call(
        _conv2d_gemm_kernel,
        out_shape=jax.ShapeDtypeStruct((N, Cout, Mp), x_nchw.dtype),
        grid_spec=pltpu.PrefetchScalarGridSpec(
            num_scalar_prefetch=0,
            grid=(N,),
            in_specs=[
                pl.BlockSpec((Cout, Kc), lambda n: (0, 0)),
                pl.BlockSpec((1, Kc, Mp), lambda n: (n, 0, 0)),
                pl.BlockSpec((Cout, 1), lambda n: (0, 0)),
            ],
            out_specs=pl.BlockSpec((1, Cout, Mp), lambda n: (n, 0, 0)),
        ),
        compiler_params=pltpu.CompilerParams(dimension_semantics=("parallel",)),
    )(w2d, patches, b2d)

    # Slice the lane padding off; (N, Cout, Ho*Wo) -> NCHW is a pure reshape.
    return out[:, :, :M].reshape(N, Cout, Ho, Wo)


if __name__ == "__main__":
    # Shapes consistent with the module: batch=2, in_channels=4, out_channels=8,
    # spatial=16, kernel_size=3, stride=1.
    N, Cin, H, W = 2, 4, 16, 16
    Cout, K, stride = 8, 3, 1

    key = jax.random.PRNGKey(0)
    kx, kw, kb = jax.random.split(key, 3)
    x = jax.random.normal(kx, (N, Cin, H, W), dtype=jnp.float32)
    # The PyTorch module initializes weight/bias to zeros; use deterministic
    # random values so the check is non-trivial.
    weight = jax.random.normal(kw, (Cout, Cin, K, K), dtype=jnp.float32) * 0.1
    bias = jax.random.normal(kb, (Cout,), dtype=jnp.float32) * 0.1

    out = my_conv2d(x, weight, bias, stride=stride)
    out = jax.block_until_ready(out)

    # Pure-JAX reference (same semantics as F.conv2d, valid padding).
    ref = jax.lax.conv_general_dilated(
        x, weight,
        window_strides=(stride, stride),
        padding="VALID",
        dimension_numbers=("NCHW", "OIHW", "NCHW"),
    ) + bias.reshape(1, Cout, 1, 1)

    assert out.shape == (N, Cout, (H - K) // stride + 1, (W - K) // stride + 1)
    assert jnp.allclose(out, ref, atol=1e-4, rtol=1e-4)
    print("KERNEL_OK")
</pallas_src>

<mosaic_0001>
module attributes {stable_mosaic.version = 11 : i64} {
  func.func @_conv2d_gemm_kernel(%arg0: i32, %arg1: memref<8x36xf32, #tpu.memory_space<vmem>>, %arg2: memref<1x36x256xf32, #tpu.memory_space<vmem>>, %arg3: memref<8x1xf32, #tpu.memory_space<vmem>>, %arg4: memref<1x8x256xf32, #tpu.memory_space<vmem>>) attributes {dimension_semantics = [#tpu.dimension_semantics<parallel>], iteration_bounds = array<i64: 2>, scalar_prefetch = 0 : i64, scratch_operands = 0 : i64, tpu.core_type = #tpu.core_type<tc>, window_params = [{pipeline_mode = #tpu.pipeline_mode<synchronous>, transform_indices = @transform_0, window_bounds = array<i64: 8, 36>}, {transform_indices = @transform_1, window_bounds = array<i64: 1, 36, 256>}, {pipeline_mode = #tpu.pipeline_mode<synchronous>, transform_indices = @transform_2, window_bounds = array<i64: 8, 1>}, {transform_indices = @transform_3, window_bounds = array<i64: 1, 8, 256>}]} {
    %c0 = arith.constant 0 : index
    %c0_0 = arith.constant 0 : index
    %0 = vector.load %arg1[%c0, %c0_0] : memref<8x36xf32, #tpu.memory_space<vmem>>, vector<8x36xf32>
    %c0_1 = arith.constant 0 : index
    %c0_2 = arith.constant 0 : index
    %c0_3 = arith.constant 0 : index
    %1 = vector.load %arg2[%c0_1, %c0_2, %c0_3] : memref<1x36x256xf32, #tpu.memory_space<vmem>>, vector<1x36x256xf32>
    %2 = vector.shape_cast %1 : vector<1x36x256xf32> to vector<36x256xf32>
    %cst = arith.constant dense<0.000000e+00> : vector<8x256xf32>
    %3 = tpu.matmul %0, %2, %cst {dimension_numbers = #tpu.dot_dimension_numbers<[1], [0], [0], [1], [0, 0, 1, 1], [], []>} : vector<8x36xf32>, vector<36x256xf32>, vector<8x256xf32> -> vector<8x256xf32>
    %c0_4 = arith.constant 0 : index
    %c0_5 = arith.constant 0 : index
    %4 = vector.load %arg3[%c0_4, %c0_5] : memref<8x1xf32, #tpu.memory_space<vmem>>, vector<8x1xf32>
    %5 = vector.broadcast %4 : vector<8x1xf32> to vector<8x256xf32>
    %6 = arith.addf %3, %5 : vector<8x256xf32>
    %c0_6 = arith.constant 0 : index
    %c0_7 = arith.constant 0 : index
    %c0_8 = arith.constant 0 : index
    %7 = vector.load %arg4[%c0_6, %c0_7, %c0_8] : memref<1x8x256xf32, #tpu.memory_space<vmem>>, vector<1x8x256xf32>
    %8 = vector.shape_cast %7 : vector<1x8x256xf32> to vector<8x256xf32>
    %9 = vector.shape_cast %6 : vector<8x256xf32> to vector<1x8x256xf32>
    tpu.vector_store %arg4[%c0_6, %c0_7, %c0_8], %9 {strides = array<i32>} : memref<1x8x256xf32, #tpu.memory_space<vmem>>, vector<1x8x256xf32>,
    return
  }
  func.func @transform_0(%arg0: i32) -> (i32, i32) {
    %c0_i32 = arith.constant 0 : i32
    %c0_i32_0 = arith.constant 0 : i32
    %c0_i32_1 = arith.constant 0 : i32
    return %c0_i32, %c0_i32_0 : i32, i32
  }
  func.func @transform_1(%arg0: i32) -> (i32, i32, i32) {
    %c0_i32 = arith.constant 0 : i32
    %c0_i32_0 = arith.constant 0 : i32
    %c0_i32_1 = arith.constant 0 : i32
    return %arg0, %c0_i32, %c0_i32_0 : i32, i32, i32
  }
  func.func @transform_2(%arg0: i32) -> (i32, i32) {
    %c0_i32 = arith.constant 0 : i32
    %c0_i32_0 = arith.constant 0 : i32
    %c0_i32_1 = arith.constant 0 : i32
    return %c0_i32, %c0_i32_0 : i32, i32
  }
  func.func @transform_3(%arg0: i32) -> (i32, i32, i32) {
    %c0_i32 = arith.constant 0 : i32
    %c0_i32_0 = arith.constant 0 : i32
    %c0_i32_1 = arith.constant 0 : i32
    return %arg0, %c0_i32, %c0_i32_0 : i32, i32, i32
  }
}

</mosaic_0001>

<llo_original>
// kernel: tpu_custom_call.1
$region0: #{tpu_custom_call.1}
  #allocation0 [shape = 'u32[]', space=smem, size = 0x4, offset = 0x4, fixed_abs, tag = 'smem constant byte address 0x4 - core index']
  #allocation1 [shape = 'u32[144,128]{1,0:T(1,128)}', space=vmem, size = 0x12000, scoped, tag = 'internal scratch']
  %s0 = inlined_call_operand.vmem [shape: f32[8,36], index: 0, kind: input, shape index: {}]
  %s1 = inlined_call_operand.vmem [shape: f32[2,36,256], index: 1, kind: input, shape index: {}]
  %s2 = inlined_call_operand.vmem [shape: f32[8,1], index: 2, kind: input, shape index: {}]
  %s3 = inlined_call_operand.hbm [shape: f32[2,8,256], index: 3, kind: output, shape index: {}]
  %s4 = sld [smem:[#allocation0]]
  $region45: #{tpu_custom_call.1} parent=0
    _
  %s6 = ssub.s32 1, %s4
  %s7 = scalar_select 0, %s6, %s4
  $region1: #{tpu_custom_call.1} parent=0
    #allocation2 [shape = 'u8[16384]{0}', space=vmem, size = 0x4000, scoped, tag = 'output window, operand 0']
    #allocation3 [shape = 's32[2]{0}', space=sflag, size = 0x8, scoped, tag = 'scoped memory for tpu_custom_call.1']
    %8 = vsyncpa [#allocation3], 0
    %s9 = scalar_lea.sflag [#allocation3], 1
    %10 = vsyncpa %s9, 0
    loop: start=0, step=1, limit=4
    $region2: #{tpu_custom_call.1} parent=1 // loop_pre_header
      _
    $region3: #{tpu_custom_call.1} parent=1 // loop_header
      %s12 = sphi 0, %s16
      %p13 = scmp.ge.s32.totalorder %s12, 4
      %s20 = sphi 0, %s20
      %s22 = sphi 0, %s20
      %s23 = sphi 0, %s22
      %s37 = sphi 0, %s23
      %s43 = sphi 0, %s45
      %s46 = sphi 0, %s43
      %s47 = sphi 0, %s46
      %s63 = sphi 0, %s47
      %s67 = sphi 0, %s67
      %s69 = sphi 0, %s67
      %s70 = sphi 0, %s69
      %s84 = sphi 0, %s70
      %s90 = sphi 0, %s92
      %s93 = sphi 0, %s90
      %s94 = sphi 0, %s93
      %s110 = sphi 0, %s94
    $region4: #{tpu_custom_call.1} parent=1 // loop_header_branch
      %15 = sbr.rel (%p13) target = $region8
    $region5: #{tpu_custom_call.1} parent=1 // loop_body
      %s17 = ssub.s32 %s12, 1
      %s18 = ssub.s32 %s12, 2
      %s19 = sadd.s32 %s12, 1
      %s21 = sadd.s32 %s20, 1
      %p24 = scmp.eq.s32.totalorder %s12, 1
      %p25 = scmp.ne.s32.totalorder %s20, %s22
      %p26 = scmp.eq.s32.totalorder %s12, 0
      %p27 = por %p25, %p26
      %p28 = scmp.ne.s32.totalorder %s20, %s22
      %p29 = scmp.eq.s32.totalorder %s17, 1
      %p30 = por %p28, %p29
      %p31 = scmp.ne.s32.totalorder %s22, %s23
      %p32 = scmp.eq.s32.totalorder %s17, 0
      %p33 = por %p31, %p32
      %p34 = scmp.ne.s32.totalorder %s22, %s23
      %p35 = scmp.eq.s32.totalorder %s18, 1
      %p36 = por %p34, %p35
      %p38 = scmp.ne.s32.totalorder %s23, %s37
      %p39 = scmp.eq.s32.totalorder %s18, 0
      %p40 = por %p38, %p39
      %s41 = ssub.s32 %s12, %s19
      %p42 = scmp.eq.s32.totalorder %s41, 0
      %s44 = sadd.s32 %s43, 1
      %s45 = scalar_select %p42, %s43, %s44
      %p48 = pneg %p42
      %p49 = scmp.eq.s32.totalorder %s12, 1
      %p50 = por %p48, %p49
      %p51 = scmp.ne.s32.totalorder %s43, %s46
      %p52 = scmp.eq.s32.totalorder %s12, 0
      %p53 = por %p51, %p52
      %p54 = scmp.ne.s32.totalorder %s43, %s46
      %p55 = scmp.eq.s32.totalorder %s17, 1
      %p56 = por %p54, %p55
      %p57 = scmp.ne.s32.totalorder %s46, %s47
      %p58 = scmp.eq.s32.totalorder %s17, 0
      %p59 = por %p57, %p58
      %p60 = scmp.ne.s32.totalorder %s46, %s47
      %p61 = scmp.eq.s32.totalorder %s18, 1
      %p62 = por %p60, %p61
      %p64 = scmp.ne.s32.totalorder %s47, %s63
      %p65 = scmp.eq.s32.totalorder %s18, 0
      %p66 = por %p64, %p65
      %s68 = sadd.s32 %s67, 1
      %p71 = scmp.eq.s32.totalorder %s12, 1
      %p72 = scmp.ne.s32.totalorder %s67, %s69
      %p73 = scmp.eq.s32.totalorder %s12, 0
      %p74 = por %p72, %p73
      %p75 = scmp.ne.s32.totalorder %s67, %s69
      %p76 = scmp.eq.s32.totalorder %s17, 1
      %p77 = por %p75, %p76
      %p78 = scmp.ne.s32.totalorder %s69, %s70
      %p79 = scmp.eq.s32.totalorder %s17, 0
      %p80 = por %p78, %p79
      %p81 = scmp.ne.s32.totalorder %s69, %s70
      %p82 = scmp.eq.s32.totalorder %s18, 1
      %p83 = por %p81, %p82
      %p85 = scmp.ne.s32.totalorder %s70, %s84
      %p86 = scmp.eq.s32.totalorder %s18, 0
      %p87 = por %p85, %p86
      %s88 = ssub.s32 %s12, %s19
      %p89 = scmp.eq.s32.totalorder %s88, 0
      %s91 = sadd.s32 %s90, 1
      %s92 = scalar_select %p89, %s90, %s91
      %p95 = pneg %p89
      %p96 = scmp.eq.s32.totalorder %s12, 1
      %p97 = por %p95, %p96
      %p98 = scmp.ne.s32.totalorder %s90, %s93
      %p99 = scmp.eq.s32.totalorder %s12, 0
      %p100 = por %p98, %p99
      %p101 = scmp.ne.s32.totalorder %s90, %s93
      %p102 = scmp.eq.s32.totalorder %s17, 1
      %p103 = por %p101, %p102
      %p104 = scmp.ne.s32.totalorder %s93, %s94
      %p105 = scmp.eq.s32.totalorder %s17, 0
      %p106 = por %p104, %p105
      %p107 = scmp.ne.s32.totalorder %s93, %s94
      %p108 = scmp.eq.s32.totalorder %s18, 1
      %p109 = por %p107, %p108
      %p111 = scmp.ne.s32.totalorder %s94, %s110
      %p112 = scmp.eq.s32.totalorder %s18, 0
      %p113 = por %p111, %p112
      %p114 = scmp.le.s32.totalorder 1, %s12
      %p115 = scmp.lt.s32.totalorder %s12, 3
      %p116 = pnand %p114, %p115
      %p117 = pneg %p116
      // Predicated region
      $region9: #{tpu_custom_call.1} parent=5 // pred_check
        _
      $region10: #{tpu_custom_call.1} parent=5 // pred_check_branch
        %119 = sbr.rel (%p116) target = $region12
      $region11: #{tpu_custom_call.1} parent=5 // pred_region
        %s120 = ssub.s32 %s12, 1
        // Predicated region
        $region13: #{tpu_custom_call.1} parent=11 // pred_check
          %p121 = pneg %p33
        $region14: #{tpu_custom_call.1} parent=11 // pred_check_branch
          %123 = sbr.rel (%p121) target = $region16
        $region15: #{tpu_custom_call.1} parent=11 // pred_region
          _
        $region16: #{tpu_custom_call.1} parent=11 // pred_fallthru
          _
        // Predicated region
        $region17: #{tpu_custom_call.1} parent=11 // pred_check
          %p124 = pneg %p80
        $region18: #{tpu_custom_call.1} parent=11 // pred_check_branch
          %126 = sbr.rel (%p124) target = $region20
        $region19: #{tpu_custom_call.1} parent=11 // pred_region
          _
        $region20: #{tpu_custom_call.1} parent=11 // pred_fallthru
          _
      $region12: #{tpu_custom_call.1} parent=5 // pred_fallthru
        _
      %p127 = scmp.lt.s32.totalorder %s12, 2
      // Predicated region
      $region21: #{tpu_custom_call.1} parent=5 // pred_check
        %p128 = pneg %p127
      $region22: #{tpu_custom_call.1} parent=5 // pred_check_branch
        %130 = sbr.rel (%p128) target = $region24
      $region23: #{tpu_custom_call.1} parent=5 // pred_region
        // Predicated region
        $region25: #{tpu_custom_call.1} parent=23 // pred_check
          %p131 = pneg %p53
        $region26: #{tpu_custom_call.1} parent=23 // pred_check_branch
          %133 = sbr.rel (%p131) target = $region28
        $region27: #{tpu_custom_call.1} parent=23 // pred_region
          %p134 = scmp.lt.s32.totalorder %s12, 1
          %s135 = scalar_select %p134, %s12, 1
          %s136 = smul.addr %s135, 10
          %s137 = smul.addr %s136, 8
          %s138 = scalar_lea.vmem %s1, %s137
        $region28: #{tpu_custom_call.1} parent=23 // pred_fallthru
          _
      $region24: #{tpu_custom_call.1} parent=5 // pred_fallthru
        _
      %p139 = scmp.le.s32.totalorder 1, %s12
      %p140 = scmp.lt.s32.totalorder %s12, 3
      %p141 = pnand %p139, %p140
      %p142 = pneg %p141
      // Predicated region
      $region29: #{tpu_custom_call.1} parent=5 // pred_check
        _
      $region30: #{tpu_custom_call.1} parent=5 // pred_check_branch
        %144 = sbr.rel (%p141) target = $region32
      $region31: #{tpu_custom_call.1} parent=5 // pred_region
        %s145 = ssub.s32 %s12, 1
        %p146 = pneg %p33
        %p147 = pneg %p30
        %p148 = scmp.lt.s32.totalorder %s17, 1
        %s149 = scalar_select %p148, %s17, 1
        %s150 = smul.addr %s149, 10
        %s151 = smul.addr %s150, 8
        %s152 = scalar_lea.vmem %s1, %s151
        %p153 = pneg %p59
        %p154 = pneg %p56
        %p155 = pneg %p80
        %p156 = pneg %p77
        %p157 = pneg %p106
        %p158 = pneg %p103
        %s159 = sand.u32 %s93, 1
        %s160 = scalar_lea.sflag [#allocation3], %s159
        %s161 = sand.u32 %s93, 1
        %s162 = smul.addr %s161, 16
        %s163 = scalar_lea.vmem [#allocation2], %s162
        %p164 = scmp.lt.s32.totalorder %s17, 1
        %s165 = scalar_select %p164, %s17, 1
        %s166 = smul.addr %s165, 10
        %s167 = smul.addr %s166, 8
        %s168 = scalar_lea.vmem %s1, %s167
        %v169 = vld [vmem:[%s0] sm:$0xff]
        %v170 = vld [vmem:[%s168] sm:$0xff]
        %v171 = vld [vmem:[%s168 + $0x8] sm:$0xff]
        %v172 = vld [vmem:[%s168 + $0x10] sm:$0xff]
        %v173 = vld [vmem:[%s168 + $0x18] sm:$0xff]
        %v174 = vld [vmem:[%s168 + $0x20] sm:$0xff]
        %v175 = vld [vmem:[%s168 + $0x28] sm:$0xff]
        %v176 = vld [vmem:[%s168 + $0x30] sm:$0xff]
        %v177 = vld [vmem:[%s168 + $0x38] sm:$0xff]
        %v178 = vld [vmem:[%s168 + $0x40] sm:$0xf]
        %v179 = vld [vmem:[%s168 + $0x48] sm:$0xf]
        %v180 = vld [vmem:[%s2] sm:$0xff]
        %182 = vset.pattern.permute.xlu0 0
        %183 = vperm.xlu0 %182, %v180
        %v184 = vpop.permute.xlu0 %183
        %vm186 = vcmask 293888
        %v188 = vsel %vm186, %v169, 0
        %vm190 = vcmask 1043456
        %v192 = vsel %vm190, %v178, 0
        %v195 = vsel %vm190, %v179, 0
        %197 = vmatprep.subr.mxu0 %v171
        %198 = vmatpush1.msra.mxu0 %v170
        %199 = vmatprep.subr.mxu0 %v173
        %200 = vmatpush1.msra.mxu0 %v172
        %201 = vmatprep.subr.mxu0 %v175
        %202 = vmatpush1.msra.mxu0 %v174
        %203 = vmatprep.subr.mxu0 %v177
        %204 = vmatpush1.msra.mxu0 %v176
        %205 = vmatprep.subr.mxu0 %v195
        %206 = vmatpush1.msra.mxu0 %v192
        %207 = vmatprep.subr.mxu0 0.0
        %208 = vmatpush1.msra.mxu0 0.0
        %209 = vmatprep.subr.mxu0 0.0
        %210 = vmatpush1.msra.mxu0 0.0
        %211 = vmatprep.subr.mxu0 0.0
        %212 = vmatpush1.msra.mxu0 0.0
        %213 = vmatprep.subr.mxu0 0.0
        %214 = vmatpush1.msra.mxu0 0.0
        %215 = vmatprep.subr.mxu0 0.0
        %216 = vmatpush1.msra.mxu0 0.0
        %217 = vmatprep.subr.mxu0 0.0
        %218 = vmatpush1.msra.mxu0 0.0
        %219 = vmatprep.subr.mxu0 0.0
        %220 = vmatpush1.msra.mxu0 0.0
        %221 = vmatprep.subr.mxu0 0.0
        %222 = vmatpush1.msra.mxu0 0.0
        %223 = vmatprep.subr.mxu0 0.0
        %224 = vmatpush1.msra.mxu0 0.0
        %225 = vmatprep.subr.mxu0 0.0
        %226 = vmatpush1.msra.mxu0 0.0
        %227 = vmatprep.subr.mxu0 0.0
        %228 = vmatpush1.msra.mxu0 0.0
        %229 = vmatprep.subr.mxu0 0.0
        %230 = vmatpush1.msra.mxu0 0.0
        %231 = vmatprep.subr.mxu0 0.0
        %232 = vmatpush1.msra.mxu0 0.0
        %233 = vmatprep.subr.mxu0 0.0
        %234 = vmatpush1.msra.mxu0 0.0
        %235 = vmatprep.subr.mxu0 0.0
        %236 = vmatpush1.msra.mxu0 0.0
        %237 = vmatprep.subr.mxu0 0.0
        %238 = vmatpush1.msra.mxu0 0.0
        %239 = vmatprep.subr.mxu0 0.0
        %240 = vmatpush1.msra.mxu0 0.0
        %241 = vmatprep.subr.mxu0 0.0
        %242 = vmatpush1.msra.mxu0 0.0
        %243 = vmatprep.subr.mxu0 0.0
        %244 = vmatpush1.msra.mxu0 0.0
        %245 = vmatprep.subr.mxu0 0.0
        %246 = vmatpush1.msra.mxu0 0.0
        %247 = vmatprep.subr.mxu0 0.0
        %248 = vmatpush1.msra.mxu0 0.0
        %249 = vmatprep.subr.mxu0 0.0
        %250 = vmatpush1.msra.mxu0 0.0
        %251 = vmatprep.subr.mxu0 0.0
        %252 = vmatpush1.msra.mxu0 0.0
        %253 = vmatprep.subr.mxu0 0.0
        %254 = vmatpush1.msra.mxu0 0.0
        %255 = vmatprep.subr.mxu0 0.0
        %256 = vmatpush1.msra.mxu0 0.0
        %257 = vmatprep.subr.mxu0 0.0
        %258 = vmatpush1.msra.mxu0 0.0
        %259 = vmatprep.subr.mxu0 0.0
        %260 = vmatpush1.msra.mxu0 0.0
        %261 = vmatprep.mubr.f32.mxu0 0.0
        %262 = vmatmul.mubr.f32.gmra.mrb[0].mxu0 %v188
        %v263 = vpop.f32.mrb[0].mxu0
        %v264 = vadd.f32 %v184, %v263
        %v265 = vpop.f32.mrb[0].mxu0
        %v266 = vadd.f32 %v184, %v265
        %267 = vdwg.mxu0
        %268 = vst [vmem:[%s163] sm:$0xff] %v264
        %269 = vst [vmem:[%s163 + $0x8] sm:$0xff] %v266
        %s270 = sand.u32 %s93, 1
        %s271 = scalar_lea.sflag [#allocation3], %s270
        %s272 = sand.u32 %s93, 1
        %s273 = smul.addr %s272, 16
        %s274 = scalar_lea.vmem [#allocation2], %s273
        // Predicated region
        $region33: #{tpu_custom_call.1} parent=31 // pred_check
          %p275 = pneg %p103
        $region34: #{tpu_custom_call.1} parent=31 // pred_check_branch
          %277 = sbr.rel (%p275) target = $region36
        $region35: #{tpu_custom_call.1} parent=31 // pred_region
          %s279 = ssub.s32 256, 256
          %280 = vsyncadd %s271, %s279
          %s281 = smul.addr %s17, 2
          %s282 = smul.addr %s281, 128
          %s283 = scalar_lea.hbm %s3, %s282
          %s285 = sshll.u32 %s274, 4
          %s286 = int_to_ptr.vmem [resolvable:$true] %s285
          %288 = dma.vmem_to_hbm [thread:$0]  %s286, 256, %s283, %s271
        $region36: #{tpu_custom_call.1} parent=31 // pred_fallthru
          _
      $region32: #{tpu_custom_call.1} parent=5 // pred_fallthru
        _
      %p289 = scmp.le.s32.totalorder 2, %s12
      // Predicated region
      $region37: #{tpu_custom_call.1} parent=5 // pred_check
        %p290 = pneg %p289
      $region38: #{tpu_custom_call.1} parent=5 // pred_check_branch
        %292 = sbr.rel (%p290) target = $region40
      $region39: #{tpu_custom_call.1} parent=5 // pred_region
        %s293 = ssub.s32 %s12, 2
        // Predicated region
        $region41: #{tpu_custom_call.1} parent=39 // pred_check
          %p294 = pneg %p109
        $region42: #{tpu_custom_call.1} parent=39 // pred_check_branch
          %296 = sbr.rel (%p294) target = $region44
        $region43: #{tpu_custom_call.1} parent=39 // pred_region
          %s297 = sand.u32 %s94, 1
          %s298 = scalar_lea.sflag [#allocation3], %s297
          %s299 = sand.u32 %s94, 1
          %s300 = smul.addr %s299, 16
          %s301 = scalar_lea.vmem [#allocation2], %s300
          %302 = dma.done %s298, 256
        $region44: #{tpu_custom_call.1} parent=39 // pred_fallthru
          _
      $region40: #{tpu_custom_call.1} parent=5 // pred_fallthru
        _
    $region6: #{tpu_custom_call.1} parent=1 // loop_footer
      %s16 = sadd.s32 1, %s12
    $region7: #{tpu_custom_call.1} parent=1 // loop_footer_branch
      %11 = sbr.rel target = $region3
    $region8: #{tpu_custom_call.1} parent=1 // loop_exit
      _
    %303 = vsyncpa [#allocation3], 1
    %s304 = scalar_lea.sflag [#allocation3], 1
    %305 = vsyncpa %s304, 1

</llo_original>
